<compile_context>
chip_gen: v6e
topology: v6e:2x2x1
jax: 0.10.0
libtpu: 0.0.40
codegen_flags: <defaults>
</compile_context>

<pallas_src>
import functools

import jax
import jax.numpy as jnp
from jax.experimental import pallas as pl
from jax.experimental.pallas import tpu as pltpu

BN_EPS = 1e-5
LEAKY_SLOPE = 0.1


# ----------------------------------------------------------------------------
# Fused kernel: conv matmul + global stats + BatchNorm + LeakyReLU epilogue
# ----------------------------------------------------------------------------
def _make_fused_kernel(block_m, inv_m, oc_sub):
    def kernel(p_ref, w_ref, g_ref, b_ref, o_ref, s1_ref, s2_ref):
        i = pl.program_id(0)
        n_tiles = pl.num_programs(0)

        # s1/s2 are resident accumulators (VMEM scratch); zero on first step.
        @pl.when(i == 0)
        def _init():
            s1_ref[...] = jnp.zeros_like(s1_ref)
            s2_ref[...] = jnp.zeros_like(s2_ref)

        # OC-major conv tile on the MXU: (OC_sub, CKKp) @ (CKKp, TM) -> (OC_sub, TM)
        acc = jnp.dot(w_ref[...], p_ref[...], preferred_element_type=jnp.float32)

        # Whole output is VMEM-resident (constant out index_map); store this tile.
        o_ref[i] = acc

        # Per-channel running sums (padded rows/cols of acc are exactly zero).
        s1_ref[...] += jnp.sum(acc, axis=1, keepdims=True)          # (OC_sub, 1)
        s2_ref[...] += jnp.sum(acc * acc, axis=1, keepdims=True)    # (OC_sub, 1)

        # Epilogue on the last grid step: BN (training-mode batch stats) + LeakyReLU.
        @pl.when(i == n_tiles - 1)
        def _finalize():
            mean = s1_ref[...] * inv_m                                   # (OC_sub, 1)
            var = jnp.maximum(s2_ref[...] * inv_m - mean * mean, 0.0)    # guard cancellation
            scale = g_ref[...] * jax.lax.rsqrt(var + BN_EPS)
            shift = b_ref[...] - mean * scale
            # Hoist the lane broadcast out of the per-tile loop.
            scale_b = jnp.broadcast_to(scale, (oc_sub, block_m))
            shift_b = jnp.broadcast_to(shift, (oc_sub, block_m))

            def body(t, carry):
                z = o_ref[t] * scale_b + shift_b
                o_ref[t] = jnp.where(z > 0, z, LEAKY_SLOPE * z)
                return carry

            jax.lax.fori_loop(0, n_tiles, body, 0)

    return kernel


# ----------------------------------------------------------------------------
# Wrapper
# ----------------------------------------------------------------------------
def _round_up(x, m):
    return (x + m - 1) // m * m


def _im2col_ckk_major(x_nchw, kh, kw, stride, padding):
    """(N, C, H, W) -> patches^T of shape (KH*KW*C, N*OH*OW), rows ordered (kh, kw, c)."""
    n, c, h, w = x_nchw.shape
    xp = jnp.pad(x_nchw, ((0, 0), (0, 0), (padding, padding), (padding, padding)))
    oh = (h + 2 * padding - kh) // stride + 1
    ow = (w + 2 * padding - kw) // stride + 1
    taps = []
    for i in range(kh):
        for j in range(kw):
            taps.append(xp[:, :, i:i + stride * oh:stride, j:j + stride * ow:stride])
    p = jnp.stack(taps, axis=0)               # (KH*KW, N, C, OH, OW)
    p = jnp.transpose(p, (0, 2, 1, 3, 4))     # (KH*KW, C, N, OH, OW)
    return p.reshape(kh * kw * c, n * oh * ow), oh, ow


@functools.partial(jax.jit, static_argnames=("stride", "padding", "block_m"))
def cnn_block_forward(x, conv_weight, bn_gamma, bn_beta, *, stride=1, padding=1,
                      block_m=1024):
    """x: (N, Cin, H, W) NCHW.  conv_weight: (OC, Cin, KH, KW).  Returns NCHW."""
    n, cin, h, w = x.shape
    oc, _, kh, kw = conv_weight.shape

    # TODO(synk): im2col is still materialized by XLA; an in-kernel halo-DMA
    # im2col would further cut HBM input traffic but is not needed for correctness.
    patches_t, oh, ow = _im2col_ckk_major(x, kh, kw, stride, padding)  # (CKK, M)
    m = n * oh * ow
    ckk = cin * kh * kw

    # Tiling / padding: OC padded only to the 8-sublane granule, CKK to 128 lanes
    # for a clean single MXU pass, M tiled by a large lane-dense block.
    oc_sub = _round_up(oc, 8)
    ckk_pad = _round_up(ckk, 128)
    block_m = min(block_m, _round_up(m, 128))
    m_pad = _round_up(m, block_m)
    n_tiles = m_pad // block_m

    # f32 operands (MXU f32 path) -> conv & BN stats track the f32 reference closely.
    p_pad = jnp.zeros((ckk_pad, m_pad), jnp.float32).at[:ckk, :m].set(
        patches_t.astype(jnp.float32))
    # Weight columns ordered (kh, kw, cin) to match the patch row ordering.
    w_t = jnp.transpose(conv_weight, (0, 2, 3, 1)).reshape(oc, ckk)
    w_p = jnp.zeros((oc_sub, ckk_pad), jnp.float32).at[:oc, :ckk].set(
        w_t.astype(jnp.float32))
    g_p = jnp.zeros((oc_sub, 1), jnp.float32).at[:oc, 0].set(bn_gamma.astype(jnp.float32))
    b_p = jnp.zeros((oc_sub, 1), jnp.float32).at[:oc, 0].set(bn_beta.astype(jnp.float32))

    # VMEM budget: double-buffered patch tiles + resident weights + resident
    # conv/output slab.  Must fit comfortably in the 32 MiB scoped limit
    # (valid on v5e/v6e/v7x); guards against silently over-tiling huge inputs.
    vmem_needed = 4 * (2 * ckk_pad * block_m        # patch tile, double-buffered
                       + 2 * oc_sub * ckk_pad       # weights
                       + 2 * n_tiles * oc_sub * block_m  # resident conv/output slab
                       + 8 * oc_sub)                # gamma/beta/stats
    assert vmem_needed < 24 * 1024 * 1024, (
        f"feature map too large for the VMEM-resident fused kernel "
        f"({vmem_needed} bytes estimated)")
    vmem_limit = 32 * 1024 * 1024

    out3d = pl.pallas_call(
        _make_fused_kernel(block_m, 1.0 / m, oc_sub),   # divide by the TRUE row count
        out_shape=jax.ShapeDtypeStruct((n_tiles, oc_sub, block_m), jnp.float32),
        grid_spec=pltpu.PrefetchScalarGridSpec(
            num_scalar_prefetch=0,
            grid=(n_tiles,),
            in_specs=[
                pl.BlockSpec((ckk_pad, block_m), lambda i: (0, i)),   # patch tile
                pl.BlockSpec((oc_sub, ckk_pad), lambda i: (0, 0)),    # resident weights
                pl.BlockSpec((oc_sub, 1), lambda i: (0, 0)),          # resident gamma
                pl.BlockSpec((oc_sub, 1), lambda i: (0, 0)),          # resident beta
            ],
            out_specs=pl.BlockSpec((n_tiles, oc_sub, block_m),
                                   lambda i: (0, 0, 0)),              # resident output
            scratch_shapes=[pltpu.VMEM((oc_sub, 1), jnp.float32),     # sum
                            pltpu.VMEM((oc_sub, 1), jnp.float32)],    # sum of squares
        ),
        compiler_params=pltpu.CompilerParams(
            dimension_semantics=("arbitrary",),   # sequential: global BN statistics
            vmem_limit_bytes=vmem_limit,
        ),
        cost_estimate=pl.CostEstimate(
            flops=2 * m_pad * ckk_pad * oc_sub + 8 * m_pad * oc_sub,
            transcendentals=oc_sub,
            bytes_accessed=(ckk_pad * m_pad * 4 + oc_sub * ckk_pad * 4
                            + n_tiles * oc_sub * block_m * 4 + 4 * oc_sub * 4),
        ),
    )(p_pad, w_p, g_p, b_p)

    # Compact OC-major result -> NCHW (cheap leading-axis transpose; no slice of
    # a 128-wide padded slab).
    out_flat = out3d.transpose(1, 0, 2).reshape(oc_sub, m_pad)[:oc, :m]
    return out_flat.reshape(oc, n, oh, ow).transpose(1, 0, 2, 3)


# ----------------------------------------------------------------------------
# Pure-JAX reference (matches PyTorch CNNBlock.forward, training-mode BN, f32)
# ----------------------------------------------------------------------------
def reference_forward(x, conv_weight, bn_gamma, bn_beta, *, stride=1, padding=1):
    y = jax.lax.conv_general_dilated(
        x, conv_weight, window_strides=(stride, stride),
        padding=[(padding, padding), (padding, padding)],
        dimension_numbers=("NCHW", "OIHW", "NCHW"))
    mean = jnp.mean(y, axis=(0, 2, 3), keepdims=True)
    var = jnp.mean((y - mean) ** 2, axis=(0, 2, 3), keepdims=True)
    yhat = (y - mean) / jnp.sqrt(var + BN_EPS)
    z = yhat * bn_gamma.reshape(1, -1, 1, 1) + bn_beta.reshape(1, -1, 1, 1)
    return jnp.where(z > 0, z, LEAKY_SLOPE * z)


if __name__ == "__main__":
    # CNNBlock(in_channels=4, out_channels=8, kernel_size=3, stride=1, padding=1)
    N, CIN, H, W = 2, 4, 16, 16
    OC, KH, KW = 8, 3, 3
    stride, padding = 1, 1

    key = jax.random.PRNGKey(0)
    kx, kw_ = jax.random.split(key)
    x = jax.random.normal(kx, (N, CIN, H, W), dtype=jnp.float32)
    conv_weight = jax.random.normal(kw_, (OC, CIN, KH, KW), dtype=jnp.float32) * 0.1
    bn_gamma = jnp.ones((OC,), dtype=jnp.float32)   # PyTorch BatchNorm2d default weight
    bn_beta = jnp.zeros((OC,), dtype=jnp.float32)   # PyTorch BatchNorm2d default bias

    out = cnn_block_forward(x, conv_weight, bn_gamma, bn_beta,
                            stride=stride, padding=padding)
    out = jax.block_until_ready(out)

    ref = reference_forward(x, conv_weight, bn_gamma, bn_beta,
                            stride=stride, padding=padding)
    assert out.shape == (N, OC, H, W)
    err = float(jnp.max(jnp.abs(out - ref)))
    assert err < 2e-3, f"mismatch vs reference: max abs err = {err}"

    print("KERNEL_OK")
</pallas_src>

<mosaic_0001>
module attributes {stable_mosaic.version = 11 : i64} {
  func.func @kernel(%arg0: i32, %arg1: memref<128x512xf32, #tpu.memory_space<vmem>>, %arg2: memref<8x128xf32, #tpu.memory_space<vmem>>, %arg3: memref<8x1xf32, #tpu.memory_space<vmem>>, %arg4: memref<8x1xf32, #tpu.memory_space<vmem>>, %arg5: memref<1x8x512xf32, #tpu.memory_space<vmem>>, %arg6: memref<8x1xf32, #tpu.memory_space<vmem>>, %arg7: memref<8x1xf32, #tpu.memory_space<vmem>>) attributes {dimension_semantics = [#tpu.dimension_semantics<arbitrary>], iteration_bounds = array<i64: 1>, scalar_prefetch = 0 : i64, scratch_operands = 2 : i64, tpu.core_type = #tpu.core_type<tc>, window_params = [{transform_indices = @transform_0, window_bounds = array<i64: 128, 512>}, {pipeline_mode = #tpu.pipeline_mode<synchronous>, transform_indices = @transform_1, window_bounds = array<i64: 8, 128>}, {pipeline_mode = #tpu.pipeline_mode<synchronous>, transform_indices = @transform_2, window_bounds = array<i64: 8, 1>}, {pipeline_mode = #tpu.pipeline_mode<synchronous>, transform_indices = @transform_3, window_bounds = array<i64: 8, 1>}, {pipeline_mode = #tpu.pipeline_mode<synchronous>, transform_indices = @transform_4, window_bounds = array<i64: 1, 8, 512>}]} {
    %c0_i32 = arith.constant 0 : i32
    %0 = arith.cmpi eq, %arg0, %c0_i32 : i32
    %1 = arith.extui %0 : i1 to i32
    %c0_i32_0 = arith.constant 0 : i32
    %2 = arith.cmpi ne, %1, %c0_i32_0 : i32
    scf.if %2 {
      %cst_18 = arith.constant 0.000000e+00 : f32
      %24 = vector.broadcast %cst_18 : f32 to vector<8x1xf32>
      %c0_19 = arith.constant 0 : index
      %c0_20 = arith.constant 0 : index
      %25 = vector.load %arg6[%c0_19, %c0_20] : memref<8x1xf32, #tpu.memory_space<vmem>>, vector<8x1xf32>
      tpu.vector_store %arg6[%c0_19, %c0_20], %24 {strides = array<i32>} : memref<8x1xf32, #tpu.memory_space<vmem>>, vector<8x1xf32>,
      %cst_21 = arith.constant 0.000000e+00 : f32
      %26 = vector.broadcast %cst_21 : f32 to vector<8x1xf32>
      %c0_22 = arith.constant 0 : index
      %c0_23 = arith.constant 0 : index
      %27 = vector.load %arg7[%c0_22, %c0_23] : memref<8x1xf32, #tpu.memory_space<vmem>>, vector<8x1xf32>
      tpu.vector_store %arg7[%c0_22, %c0_23], %26 {strides = array<i32>} : memref<8x1xf32, #tpu.memory_space<vmem>>, vector<8x1xf32>,
    } else {
    }
    %c0 = arith.constant 0 : index
    %c0_1 = arith.constant 0 : index
    %3 = vector.load %arg2[%c0, %c0_1] : memref<8x128xf32, #tpu.memory_space<vmem>>, vector<8x128xf32>
    %c0_2 = arith.constant 0 : index
    %c0_3 = arith.constant 0 : index
    %4 = vector.load %arg1[%c0_2, %c0_3] : memref<128x512xf32, #tpu.memory_space<vmem>>, vector<128x512xf32>
    %cst = arith.constant dense<0.000000e+00> : vector<8x512xf32>
    %5 = tpu.matmul %3, %4, %cst {dimension_numbers = #tpu.dot_dimension_numbers<[1], [0], [0], [1], [0, 0, 1, 1], [], []>} : vector<8x128xf32>, vector<128x512xf32>, vector<8x512xf32> -> vector<8x512xf32>
    %6 = arith.index_cast %arg0 : i32 to index
    %c0_4 = arith.constant 0 : index
    %c0_5 = arith.constant 0 : index
    %7 = vector.load %arg5[%6, %c0_4, %c0_5] : memref<1x8x512xf32, #tpu.memory_space<vmem>>, vector<1x8x512xf32>
    %8 = vector.shape_cast %7 : vector<1x8x512xf32> to vector<8x512xf32>
    %9 = vector.shape_cast %5 : vector<8x512xf32> to vector<1x8x512xf32>
    tpu.vector_store %arg5[%6, %c0_4, %c0_5], %9 {strides = array<i32>} : memref<1x8x512xf32, #tpu.memory_space<vmem>>, vector<1x8x512xf32>,
    %c0_6 = arith.constant 0 : index
    %c0_7 = arith.constant 0 : index
    %10 = vector.load %arg6[%c0_6, %c0_7] : memref<8x1xf32, #tpu.memory_space<vmem>>, vector<8x1xf32>
    %cst_8 = arith.constant dense<0.000000e+00> : vector<8xf32>
    %11 = vector.multi_reduction <add>, %5, %cst_8 [1] : vector<8x512xf32> to vector<8xf32>
    %12 = vector.shape_cast %11 : vector<8xf32> to vector<8x1xf32>
    %13 = arith.addf %10, %12 : vector<8x1xf32>
    %c0_9 = arith.constant 0 : index
    %c0_10 = arith.constant 0 : index
    %14 = vector.load %arg6[%c0_9, %c0_10] : memref<8x1xf32, #tpu.memory_space<vmem>>, vector<8x1xf32>
    tpu.vector_store %arg6[%c0_9, %c0_10], %13 {strides = array<i32>} : memref<8x1xf32, #tpu.memory_space<vmem>>, vector<8x1xf32>,
    %c0_11 = arith.constant 0 : index
    %c0_12 = arith.constant 0 : index
    %15 = vector.load %arg7[%c0_11, %c0_12] : memref<8x1xf32, #tpu.memory_space<vmem>>, vector<8x1xf32>
    %16 = arith.mulf %5, %5 : vector<8x512xf32>
    %cst_13 = arith.constant dense<0.000000e+00> : vector<8xf32>
    %17 = vector.multi_reduction <add>, %16, %cst_13 [1] : vector<8x512xf32> to vector<8xf32>
    %18 = vector.shape_cast %17 : vector<8xf32> to vector<8x1xf32>
    %19 = arith.addf %15, %18 : vector<8x1xf32>
    %c0_14 = arith.constant 0 : index
    %c0_15 = arith.constant 0 : index
    %20 = vector.load %arg7[%c0_14, %c0_15] : memref<8x1xf32, #tpu.memory_space<vmem>>, vector<8x1xf32>
    tpu.vector_store %arg7[%c0_14, %c0_15], %19 {strides = array<i32>} : memref<8x1xf32, #tpu.memory_space<vmem>>, vector<8x1xf32>,
    %c0_i32_16 = arith.constant 0 : i32
    %21 = arith.cmpi eq, %arg0, %c0_i32_16 : i32
    %22 = arith.extui %21 : i1 to i32
    %c0_i32_17 = arith.constant 0 : i32
    %23 = arith.cmpi ne, %22, %c0_i32_17 : i32
    scf.if %23 {
      %c0_18 = arith.constant 0 : index
      %c0_19 = arith.constant 0 : index
      %24 = vector.load %arg6[%c0_18, %c0_19] : memref<8x1xf32, #tpu.memory_space<vmem>>, vector<8x1xf32>
      %cst_20 = arith.constant 0.001953125 : f32
      %25 = vector.broadcast %cst_20 : f32 to vector<8x1xf32>
      %26 = arith.mulf %24, %25 : vector<8x1xf32>
      %c0_21 = arith.constant 0 : index
      %c0_22 = arith.constant 0 : index
      %27 = vector.load %arg7[%c0_21, %c0_22] : memref<8x1xf32, #tpu.memory_space<vmem>>, vector<8x1xf32>
      %cst_23 = arith.constant 0.001953125 : f32
      %28 = vector.broadcast %cst_23 : f32 to vector<8x1xf32>
      %29 = arith.mulf %27, %28 : vector<8x1xf32>
      %30 = arith.mulf %26, %26 : vector<8x1xf32>
      %31 = arith.subf %29, %30 : vector<8x1xf32>
      %cst_24 = arith.constant 0.000000e+00 : f32
      %32 = vector.broadcast %cst_24 : f32 to vector<8x1xf32>
      %33 = arith.maximumf %31, %32 : vector<8x1xf32>
      %c0_25 = arith.constant 0 : index
      %c0_26 = arith.constant 0 : index
      %34 = vector.load %arg3[%c0_25, %c0_26] : memref<8x1xf32, #tpu.memory_space<vmem>>, vector<8x1xf32>
      %cst_27 = arith.constant 9.99999974E-6 : f32
      %35 = vector.broadcast %cst_27 : f32 to vector<8x1xf32>
      %36 = arith.addf %33, %35 : vector<8x1xf32>
      %37 = math.rsqrt %36 : vector<8x1xf32>
      %38 = arith.mulf %34, %37 : vector<8x1xf32>
      %c0_28 = arith.constant 0 : index
      %c0_29 = arith.constant 0 : index
      %39 = vector.load %arg4[%c0_28, %c0_29] : memref<8x1xf32, #tpu.memory_space<vmem>>, vector<8x1xf32>
      %40 = arith.mulf %26, %38 : vector<8x1xf32>
      %41 = arith.subf %39, %40 : vector<8x1xf32>
      %42 = vector.shape_cast %38 : vector<8x1xf32> to vector<8x1xf32>
      %43 = vector.broadcast %42 : vector<8x1xf32> to vector<8x512xf32>
      %44 = vector.shape_cast %41 : vector<8x1xf32> to vector<8x1xf32>
      %45 = vector.broadcast %44 : vector<8x1xf32> to vector<8x512xf32>
      %c0_i32_30 = arith.constant 0 : i32
      %46 = arith.index_cast %c0_i32_30 : i32 to index
      %c0_31 = arith.constant 0 : index
      %c0_32 = arith.constant 0 : index
      %47 = vector.load %arg5[%46, %c0_31, %c0_32] : memref<1x8x512xf32, #tpu.memory_space<vmem>>, vector<1x8x512xf32>
      %48 = vector.shape_cast %47 : vector<1x8x512xf32> to vector<8x512xf32>
      %49 = arith.mulf %48, %43 : vector<8x512xf32>
      %50 = arith.addf %49, %45 : vector<8x512xf32>
      %cst_33 = arith.constant 0.000000e+00 : f32
      %51 = vector.broadcast %cst_33 : f32 to vector<8x512xf32>
      %52 = arith.cmpf ogt, %50, %51 : vector<8x512xf32>
      %cst_34 = arith.constant 1.000000e-01 : f32
      %53 = vector.broadcast %cst_34 : f32 to vector<8x512xf32>
      %54 = arith.mulf %53, %50 : vector<8x512xf32>
      %55 = arith.select %52, %50, %54 : vector<8x512xi1>, vector<8x512xf32>
      %56 = arith.index_cast %c0_i32_30 : i32 to index
      %c0_35 = arith.constant 0 : index
      %c0_36 = arith.constant 0 : index
      %57 = vector.load %arg5[%56, %c0_35, %c0_36] : memref<1x8x512xf32, #tpu.memory_space<vmem>>, vector<1x8x512xf32>
      %58 = vector.shape_cast %57 : vector<1x8x512xf32> to vector<8x512xf32>
      %59 = vector.shape_cast %55 : vector<8x512xf32> to vector<1x8x512xf32>
      tpu.vector_store %arg5[%56, %c0_35, %c0_36], %59 {strides = array<i32>} : memref<1x8x512xf32, #tpu.memory_space<vmem>>, vector<1x8x512xf32>,
      %c1_i32 = arith.constant 1 : i32
    } else {
    }
    return
  }
  func.func @transform_0(%arg0: i32) -> (i32, i32) {
    %c0_i32 = arith.constant 0 : i32
    %c0_i32_0 = arith.constant 0 : i32
    return %c0_i32, %arg0 : i32, i32
  }
  func.func @transform_1(%arg0: i32) -> (i32, i32) {
    %c0_i32 = arith.constant 0 : i32
    %c0_i32_0 = arith.constant 0 : i32
    %c0_i32_1 = arith.constant 0 : i32
    return %c0_i32, %c0_i32_0 : i32, i32
  }
  func.func @transform_2(%arg0: i32) -> (i32, i32) {
    %c0_i32 = arith.constant 0 : i32
    %c0_i32_0 = arith.constant 0 : i32
    %c0_i32_1 = arith.constant 0 : i32
    return %c0_i32, %c0_i32_0 : i32, i32
  }
  func.func @transform_3(%arg0: i32) -> (i32, i32) {
    %c0_i32 = arith.constant 0 : i32
    %c0_i32_0 = arith.constant 0 : i32
    %c0_i32_1 = arith.constant 0 : i32
    return %c0_i32, %c0_i32_0 : i32, i32
  }
  func.func @transform_4(%arg0: i32) -> (i32, i32, i32) {
    %c0_i32 = arith.constant 0 : i32
    %c0_i32_0 = arith.constant 0 : i32
    %c0_i32_1 = arith.constant 0 : i32
    %c0_i32_2 = arith.constant 0 : i32
    return %c0_i32, %c0_i32_0, %c0_i32_1 : i32, i32, i32
  }
}

</mosaic_0001>

<llo_original>
// kernel: cnn_block_forward.1
$region0: #{cnn_block_forward.1}
  #allocation0 [shape = 'u32[]', space=smem, size = 0x4, offset = 0x4, fixed_abs, tag = 'smem constant byte address 0x4 - core index']
  #allocation1 [shape = 'u32[144,128]{1,0:T(1,128)}', space=vmem, size = 0x12000, scoped, tag = 'internal scratch']
  #allocation2 [shape = 'f32[8,1]{1,0:T(8,128)}', space=vmem, size = 0x1000, scoped, tag = 'scratch operand']
  #allocation3 [shape = 'f32[8,1]{1,0:T(8,128)}', space=vmem, size = 0x1000, scoped, tag = 'scratch operand']
  %s0 = inlined_call_operand.vmem [shape: f32[128,512], index: 0, kind: input, shape index: {}]
  %s1 = inlined_call_operand.vmem [shape: f32[8,128], index: 1, kind: input, shape index: {}]
  %s2 = inlined_call_operand.vmem [shape: f32[8,1], index: 2, kind: input, shape index: {}]
  %s3 = inlined_call_operand.vmem [shape: f32[8,1], index: 3, kind: input, shape index: {}]
  %s4 = inlined_call_operand.vmem [shape: f32[1,8,512], index: 4, kind: output, shape index: {}]
  %s5 = sld [smem:[#allocation0]]
  $region34: #{cnn_block_forward.1} parent=0
    _
  %s7 = ssub.s32 1, %s5
  %s8 = scalar_select 0, %s7, %s5
  // Predicated region
  $region2: #{cnn_block_forward.1} parent=0 // pred_check
    _
  $region3: #{cnn_block_forward.1} parent=0 // pred_check_branch
    %10 = sbr.rel (0) target = $region5
  $region4: #{cnn_block_forward.1} parent=0 // pred_region
    _
  $region5: #{cnn_block_forward.1} parent=0 // pred_fallthru
    _
  // Predicated region
  $region6: #{cnn_block_forward.1} parent=0 // pred_check
    _
  $region7: #{cnn_block_forward.1} parent=0 // pred_check_branch
    %12 = sbr.rel (0) target = $region9
  $region8: #{cnn_block_forward.1} parent=0 // pred_region
    _
  $region9: #{cnn_block_forward.1} parent=0 // pred_fallthru
    _
  // Predicated region
  $region10: #{cnn_block_forward.1} parent=0 // pred_check
    _
  $region11: #{cnn_block_forward.1} parent=0 // pred_check_branch
    %14 = sbr.rel (0) target = $region13
  $region12: #{cnn_block_forward.1} parent=0 // pred_region
    _
  $region13: #{cnn_block_forward.1} parent=0 // pred_fallthru
    _
  // Predicated region
  $region14: #{cnn_block_forward.1} parent=0 // pred_check
    _
  $region15: #{cnn_block_forward.1} parent=0 // pred_check_branch
    %16 = sbr.rel (0) target = $region17
  $region16: #{cnn_block_forward.1} parent=0 // pred_region
    _
  $region17: #{cnn_block_forward.1} parent=0 // pred_fallthru
    _
  %p17 = scmp.eq.s32.totalorder 0, 0
  // Predicated region
  $region18: #{cnn_block_forward.1} parent=0 // pred_check
    %p18 = pneg %p17
  $region19: #{cnn_block_forward.1} parent=0 // pred_check_branch
    %20 = sbr.rel (%p18) target = $region21
  $region20: #{cnn_block_forward.1} parent=0 // pred_region
    %vm21 = vcmask 7168
    %22 = vst.msk [vmem:[#allocation2] sm:$0xff] %vm21, 0.0
    %23 = vst.msk [vmem:[#allocation3] sm:$0xff] %vm21, 0.0
  $region21: #{cnn_block_forward.1} parent=0 // pred_fallthru
    _
  %v24 = vld [vmem:[%s1] sm:$0xff]
  %v25 = vld [vmem:[%s0] sm:$0xff]
  %v26 = vld [vmem:[%s0 + $0x8] sm:$0xff]
  %v27 = vld [vmem:[%s0 + $0x10] sm:$0xff]
  %v28 = vld [vmem:[%s0 + $0x18] sm:$0xff]
  %v29 = vld [vmem:[%s0 + $0x20] sm:$0xff]
  %v30 = vld [vmem:[%s0 + $0x28] sm:$0xff]
  %v31 = vld [vmem:[%s0 + $0x30] sm:$0xff]
  %v32 = vld [vmem:[%s0 + $0x38] sm:$0xff]
  %v33 = vld [vmem:[%s0 + $0x40] sm:$0xff]
  %v34 = vld [vmem:[%s0 + $0x48] sm:$0xff]
  %v35 = vld [vmem:[%s0 + $0x50] sm:$0xff]
  %v36 = vld [vmem:[%s0 + $0x58] sm:$0xff]
  %v37 = vld [vmem:[%s0 + $0x60] sm:$0xff]
  %v38 = vld [vmem:[%s0 + $0x68] sm:$0xff]
  %v39 = vld [vmem:[%s0 + $0x70] sm:$0xff]
  %v40 = vld [vmem:[%s0 + $0x78] sm:$0xff]
  %v41 = vld [vmem:[%s0 + $0x80] sm:$0xff]
  %v42 = vld [vmem:[%s0 + $0x88] sm:$0xff]
  %v43 = vld [vmem:[%s0 + $0x90] sm:$0xff]
  %v44 = vld [vmem:[%s0 + $0x98] sm:$0xff]
  %v45 = vld [vmem:[%s0 + $0xa0] sm:$0xff]
  %v46 = vld [vmem:[%s0 + $0xa8] sm:$0xff]
  %v47 = vld [vmem:[%s0 + $0xb0] sm:$0xff]
  %v48 = vld [vmem:[%s0 + $0xb8] sm:$0xff]
  %v49 = vld [vmem:[%s0 + $0xc0] sm:$0xff]
  %v50 = vld [vmem:[%s0 + $0xc8] sm:$0xff]
  %v51 = vld [vmem:[%s0 + $0xd0] sm:$0xff]
  %v52 = vld [vmem:[%s0 + $0xd8] sm:$0xff]
  %v53 = vld [vmem:[%s0 + $0xe0] sm:$0xff]
  %v54 = vld [vmem:[%s0 + $0xe8] sm:$0xff]
  %v55 = vld [vmem:[%s0 + $0xf0] sm:$0xff]
  %v56 = vld [vmem:[%s0 + $0xf8] sm:$0xff]
  %v57 = vld [vmem:[%s0 + $0x100] sm:$0xff]
  %v58 = vld [vmem:[%s0 + $0x108] sm:$0xff]
  %v59 = vld [vmem:[%s0 + $0x110] sm:$0xff]
  %v60 = vld [vmem:[%s0 + $0x118] sm:$0xff]
  %v61 = vld [vmem:[%s0 + $0x120] sm:$0xff]
  %v62 = vld [vmem:[%s0 + $0x128] sm:$0xff]
  %v63 = vld [vmem:[%s0 + $0x130] sm:$0xff]
  %v64 = vld [vmem:[%s0 + $0x138] sm:$0xff]
  %v65 = vld [vmem:[%s0 + $0x140] sm:$0xff]
  %v66 = vld [vmem:[%s0 + $0x148] sm:$0xff]
  %v67 = vld [vmem:[%s0 + $0x150] sm:$0xff]
  %v68 = vld [vmem:[%s0 + $0x158] sm:$0xff]
  %v69 = vld [vmem:[%s0 + $0x160] sm:$0xff]
  %v70 = vld [vmem:[%s0 + $0x168] sm:$0xff]
  %v71 = vld [vmem:[%s0 + $0x170] sm:$0xff]
  %v72 = vld [vmem:[%s0 + $0x178] sm:$0xff]
  %v73 = vld [vmem:[%s0 + $0x180] sm:$0xff]
  %v74 = vld [vmem:[%s0 + $0x188] sm:$0xff]
  %v75 = vld [vmem:[%s0 + $0x190] sm:$0xff]
  %v76 = vld [vmem:[%s0 + $0x198] sm:$0xff]
  %v77 = vld [vmem:[%s0 + $0x1a0] sm:$0xff]
  %v78 = vld [vmem:[%s0 + $0x1a8] sm:$0xff]
  %v79 = vld [vmem:[%s0 + $0x1b0] sm:$0xff]
  %v80 = vld [vmem:[%s0 + $0x1b8] sm:$0xff]
  %v81 = vld [vmem:[%s0 + $0x1c0] sm:$0xff]
  %v82 = vld [vmem:[%s0 + $0x1c8] sm:$0xff]
  %v83 = vld [vmem:[%s0 + $0x1d0] sm:$0xff]
  %v84 = vld [vmem:[%s0 + $0x1d8] sm:$0xff]
  %v85 = vld [vmem:[%s0 + $0x1e0] sm:$0xff]
  %v86 = vld [vmem:[%s0 + $0x1e8] sm:$0xff]
  %v87 = vld [vmem:[%s0 + $0x1f0] sm:$0xff]
  %v88 = vld [vmem:[%s0 + $0x1f8] sm:$0xff]
  %89 = vmatprep.subr.mxu0 %v86
  %90 = vmatpush1.msra.mxu0 %v85
  %91 = vmatprep.subr.mxu0 %v82
  %92 = vmatpush1.msra.mxu0 %v81
  %93 = vmatprep.subr.mxu0 %v78
  %94 = vmatpush1.msra.mxu0 %v77
  %95 = vmatprep.subr.mxu0 %v74
  %96 = vmatpush1.msra.mxu0 %v73
  %97 = vmatprep.subr.mxu0 %v70
  %98 = vmatpush1.msra.mxu0 %v69
  %99 = vmatprep.subr.mxu0 %v66
  %100 = vmatpush1.msra.mxu0 %v65
  %101 = vmatprep.subr.mxu0 %v62
  %102 = vmatpush1.msra.mxu0 %v61
  %103 = vmatprep.subr.mxu0 %v58
  %104 = vmatpush1.msra.mxu0 %v57
  %105 = vmatprep.subr.mxu0 %v54
  %106 = vmatpush1.msra.mxu0 %v53
  %107 = vmatprep.subr.mxu0 %v50
  %108 = vmatpush1.msra.mxu0 %v49
  %109 = vmatprep.subr.mxu0 %v46
  %110 = vmatpush1.msra.mxu0 %v45
  %111 = vmatprep.subr.mxu0 %v42
  %112 = vmatpush1.msra.mxu0 %v41
  %113 = vmatprep.subr.mxu0 %v38
  %114 = vmatpush1.msra.mxu0 %v37
  %115 = vmatprep.subr.mxu0 %v34
  %116 = vmatpush1.msra.mxu0 %v33
  %117 = vmatprep.subr.mxu0 %v30
  %118 = vmatpush1.msra.mxu0 %v29
  %119 = vmatprep.subr.mxu0 %v26
  %120 = vmatpush1.msra.mxu0 %v25
  %121 = vmatprep.subr.mxu0 0.0
  %122 = vmatpush2.msra.mxu0 0.0
  %123 = vmatprep.subr.mxu0 0.0
  %124 = vmatpush2.msra.mxu0 0.0
  %125 = vmatprep.subr.mxu0 0.0
  %126 = vmatpush2.msra.mxu0 0.0
  %127 = vmatprep.subr.mxu0 0.0
  %128 = vmatpush2.msra.mxu0 0.0
  %129 = vmatprep.subr.mxu0 0.0
  %130 = vmatpush2.msra.mxu0 0.0
  %131 = vmatprep.subr.mxu0 0.0
  %132 = vmatpush2.msra.mxu0 0.0
  %133 = vmatprep.subr.mxu0 0.0
  %134 = vmatpush2.msra.mxu0 0.0
  %135 = vmatprep.subr.mxu0 0.0
  %136 = vmatpush2.msra.mxu0 0.0
  %137 = vmatprep.subr.mxu0 0.0
  %138 = vmatpush2.msra.mxu0 0.0
  %139 = vmatprep.subr.mxu0 0.0
  %140 = vmatpush2.msra.mxu0 0.0
  %141 = vmatprep.subr.mxu0 0.0
  %142 = vmatpush2.msra.mxu0 0.0
  %143 = vmatprep.subr.mxu0 0.0
  %144 = vmatpush2.msra.mxu0 0.0
  %145 = vmatprep.subr.mxu0 0.0
  %146 = vmatpush2.msra.mxu0 0.0
  %147 = vmatprep.subr.mxu0 0.0
  %148 = vmatpush2.msra.mxu0 0.0
  %149 = vmatprep.subr.mxu0 0.0
  %150 = vmatpush2.msra.mxu0 0.0
  %151 = vmatprep.subr.mxu0 0.0
  %152 = vmatpush2.msra.mxu0 0.0
  %153 = vmatprep.mubr.f32.mxu0 0.0
  %154 = vmatmul.mubr.f32.gmra.mxu0 %v24
  %v155 = vpop.f32.mrf.mxu0
  %v156 = vadd.f32 0.0, %v155
  %v157 = vpop.f32.mrf.mxu0
  %v158 = vadd.f32 0.0, %v157
  %159 = vdwg.mxu0
  %160 = vmatprep.subr.mxu0 %v88
  %161 = vmatpush1.msra.mxu0 %v87
  %162 = vmatprep.subr.mxu0 %v84
  %163 = vmatpush1.msra.mxu0 %v83
  %164 = vmatprep.subr.mxu0 %v80
  %165 = vmatpush1.msra.mxu0 %v79
  %166 = vmatprep.subr.mxu0 %v76
  %167 = vmatpush1.msra.mxu0 %v75
  %168 = vmatprep.subr.mxu0 %v72
  %169 = vmatpush1.msra.mxu0 %v71
  %170 = vmatprep.subr.mxu0 %v68
  %171 = vmatpush1.msra.mxu0 %v67
  %172 = vmatprep.subr.mxu0 %v64
  %173 = vmatpush1.msra.mxu0 %v63
  %174 = vmatprep.subr.mxu0 %v60
  %175 = vmatpush1.msra.mxu0 %v59
  %176 = vmatprep.subr.mxu0 %v56
  %177 = vmatpush1.msra.mxu0 %v55
  %178 = vmatprep.subr.mxu0 %v52
  %179 = vmatpush1.msra.mxu0 %v51
  %180 = vmatprep.subr.mxu0 %v48
  %181 = vmatpush1.msra.mxu0 %v47
  %182 = vmatprep.subr.mxu0 %v44
  %183 = vmatpush1.msra.mxu0 %v43
  %184 = vmatprep.subr.mxu0 %v40
  %185 = vmatpush1.msra.mxu0 %v39
  %186 = vmatprep.subr.mxu0 %v36
  %187 = vmatpush1.msra.mxu0 %v35
  %188 = vmatprep.subr.mxu0 %v32
  %189 = vmatpush1.msra.mxu0 %v31
  %190 = vmatprep.subr.mxu0 %v28
  %191 = vmatpush1.msra.mxu0 %v27
  %192 = vmatprep.subr.mxu0 0.0
  %193 = vmatpush2.msra.mxu0 0.0
  %194 = vmatprep.subr.mxu0 0.0
  %195 = vmatpush2.msra.mxu0 0.0
  %196 = vmatprep.subr.mxu0 0.0
  %197 = vmatpush2.msra.mxu0 0.0
  %198 = vmatprep.subr.mxu0 0.0
  %199 = vmatpush2.msra.mxu0 0.0
  %200 = vmatprep.subr.mxu0 0.0
  %201 = vmatpush2.msra.mxu0 0.0
  %202 = vmatprep.subr.mxu0 0.0
  %203 = vmatpush2.msra.mxu0 0.0
  %204 = vmatprep.subr.mxu0 0.0
  %205 = vmatpush2.msra.mxu0 0.0
  %206 = vmatprep.subr.mxu0 0.0
  %207 = vmatpush2.msra.mxu0 0.0
  %208 = vmatprep.subr.mxu0 0.0
  %209 = vmatpush2.msra.mxu0 0.0
  %210 = vmatprep.subr.mxu0 0.0
  %211 = vmatpush2.msra.mxu0 0.0
  %212 = vmatprep.subr.mxu0 0.0
  %213 = vmatpush2.msra.mxu0 0.0
  %214 = vmatprep.subr.mxu0 0.0
  %215 = vmatpush2.msra.mxu0 0.0
  %216 = vmatprep.subr.mxu0 0.0
  %217 = vmatpush2.msra.mxu0 0.0
  %218 = vmatprep.subr.mxu0 0.0
  %219 = vmatpush2.msra.mxu0 0.0
  %220 = vmatprep.subr.mxu0 0.0
  %221 = vmatpush2.msra.mxu0 0.0
  %222 = vmatprep.subr.mxu0 0.0
  %223 = vmatpush2.msra.mxu0 0.0
  %224 = vmatprep.mubr.f32.mxu0 0.0
  %225 = vmatmul.mubr.f32.gmra.mxu0 %v24
  %v226 = vpop.f32.mrf.mxu0
  %v227 = vadd.f32 0.0, %v226
  %v228 = vpop.f32.mrf.mxu0
  %v229 = vadd.f32 0.0, %v228
  %230 = vdwg.mxu0
  %s231 = smul.u32 0, 4
  %s232 = smul.addr %s231, 8
  %s233 = scalar_lea.vmem %s4, %s232
  %234 = vst [vmem:[%s233] sm:$0xff] %v156
  %235 = vst [vmem:[%s233 + $0x8] sm:$0xff] %v158
  %236 = vst [vmem:[%s233 + $0x10] sm:$0xff] %v227
  %237 = vst [vmem:[%s233 + $0x18] sm:$0xff] %v229
  %v238 = vld [vmem:[#allocation2] sm:$0xff]
  %v239 = vadd.f32 %v156, %v158
  %v240 = vadd.f32 %v239, %v227
  %v241 = vadd.f32 %v240, %v229
  %242 = vadd.xlane.f32.xlu0 %v241
  %v243 = vpop.xlane.xlu0 %242
  %v244 = vadd.f32 %v238, %v243
  %vm245 = vcmask 7168
  %246 = vst.msk [vmem:[#allocation2] sm:$0xff] %vm245, %v244
  %v247 = vld [vmem:[#allocation3] sm:$0xff]
  %v248 = vmul.f32 %v156, %v156
  %v249 = vmul.f32 %v158, %v158
  %v250 = vmul.f32 %v227, %v227
  %v251 = vmul.f32 %v229, %v229
  %v252 = vadd.f32 %v248, %v249
  %v253 = vadd.f32 %v252, %v250
  %v254 = vadd.f32 %v253, %v251
  %255 = vadd.xlane.f32.xlu0 %v254
  %v256 = vpop.xlane.xlu0 %255
  %v257 = vadd.f32 %v247, %v256
  %258 = vst.msk [vmem:[#allocation3] sm:$0xff] %vm245, %v257
  // Predicated region
  $region22: #{cnn_block_forward.1} parent=0 // pred_check
    %p259 = pneg %p17
  $region23: #{cnn_block_forward.1} parent=0 // pred_check_branch
    %261 = sbr.rel (%p259) target = $region25
  $region24: #{cnn_block_forward.1} parent=0 // pred_region
    %v262 = vld [vmem:[#allocation2] sm:$0xff]
    %v263 = vmul.f32 %v262, 0.001953125
    %v264 = vld [vmem:[#allocation3] sm:$0xff]
    %v265 = vmul.f32 %v264, 0.001953125
    %v266 = vmul.f32 %v263, %v263
    %v267 = vsub.f32 %v265, %v266
    %v268 = vmax.f32 %v267, 0.0
    %v269 = vld [vmem:[%s2] sm:$0xff]
    %v270 = vadd.f32 %v268, 1e-05
    %v271 = vrsqrt.pop %v270
    %v272 = vmul.f32 %v269, %v271
    %v273 = vld [vmem:[%s3] sm:$0xff]
    %v274 = vmul.f32 %v263, %v272
    %v275 = vsub.f32 %v273, %v274
    %277 = vset.pattern.permute.xlu0 0
    %278 = vperm.xlu0 %277, %v272
    %v279 = vpop.permute.xlu0 %278
    %282 = vset.pattern.permute.xlu0 0
    %283 = vperm.xlu0 %282, %v275
    %v284 = vpop.permute.xlu0 %283
    %v286 = vld [vmem:[%s4] sm:$0xff]
    %v287 = vld [vmem:[%s4 + $0x8] sm:$0xff]
    %v288 = vld [vmem:[%s4 + $0x10] sm:$0xff]
    %v289 = vld [vmem:[%s4 + $0x18] sm:$0xff]
    %v290 = vmul.f32 %v286, %v279
    %v291 = vmul.f32 %v287, %v279
    %v292 = vmul.f32 %v288, %v279
    %v293 = vmul.f32 %v289, %v279
    %v294 = vadd.f32 %v290, %v284
    %v295 = vadd.f32 %v291, %v284
    %v296 = vadd.f32 %v292, %v284
    %v297 = vadd.f32 %v293, %v284
    %vm298 = vcmp.gt.f32.partialorder %v294, 0.0
    %vm299 = vcmp.gt.f32.partialorder %v295, 0.0
    %vm300 = vcmp.gt.f32.partialorder %v296, 0.0
    %vm301 = vcmp.gt.f32.partialorder %v297, 0.0
    %v302 = vmul.f32 %v294, 0.1
    %v303 = vmul.f32 %v295, 0.1
    %v304 = vmul.f32 %v296, 0.1
    %v305 = vmul.f32 %v297, 0.1
    %v306 = vsel %vm298, %v294, %v302
    %v307 = vsel %vm299, %v295, %v303
    %v308 = vsel %vm300, %v296, %v304
    %v309 = vsel %vm301, %v297, %v305
    %310 = vst [vmem:[%s4] sm:$0xff] %v306
    %311 = vst [vmem:[%s4 + $0x8] sm:$0xff] %v307
    %312 = vst [vmem:[%s4 + $0x10] sm:$0xff] %v308
    %313 = vst [vmem:[%s4 + $0x18] sm:$0xff] %v309
  $region25: #{cnn_block_forward.1} parent=0 // pred_fallthru
    _
  // Predicated region
  $region26: #{cnn_block_forward.1} parent=0 // pred_check
    _
  $region27: #{cnn_block_forward.1} parent=0 // pred_check_branch
    %315 = sbr.rel (0) target = $region29
  $region28: #{cnn_block_forward.1} parent=0 // pred_region
    _
  $region29: #{cnn_block_forward.1} parent=0 // pred_fallthru
    _
  // Predicated region
  $region30: #{cnn_block_forward.1} parent=0 // pred_check
    _
  $region31: #{cnn_block_forward.1} parent=0 // pred_check_branch
    %317 = sbr.rel (0) target = $region33
  $region32: #{cnn_block_forward.1} parent=0 // pred_region
    _
  $region33: #{cnn_block_forward.1} parent=0 // pred_fallthru
    _

</llo_original>
